<compile_context>
chip_gen: v5e
topology: v5e:2x2
jax: 0.10.0
libtpu: 0.0.40
codegen_flags: <defaults>
</compile_context>

<pallas_src>
import jax
import jax.numpy as jnp
from jax.experimental import pallas as pl
from jax.experimental.pallas import tpu as pltpu


def _copy_kernel(x_ref, o_ref):
    # Input and output tiles share the same (TR, TL) shape: the body is a pure
    # full-tile vld/vst copy; all the real work is the auto-pipelined DMA.
    # NOTE: edge blocks contain padded (undefined) lanes/rows — fine for a
    # straight copy, but do NOT add reductions over the tile here.
    o_ref[...] = x_ref[...]


def _dma_chomp_kernel(l_out, x_ref, o_ref, sem):
    # Direct strided HBM->HBM copy of the kept window; no VMEM round-trip.
    cp = pltpu.make_async_copy(x_ref.at[:, :l_out], o_ref, sem)
    cp.start()
    cp.wait()


def _vmem_limit_bytes() -> int:
    """Scoped-VMEM limit sized per chip generation (v7x has only 64 MiB)."""
    try:
        cap = int(pltpu.get_tpu_info().vmem_capacity_bytes)
    except Exception:
        cap = 64 * 1024 * 1024  # conservative default = v7x physical VMEM
    return min((cap * 3) // 4, 96 * 1024 * 1024)  # v7x -> 48 MiB, v5e/v6e -> 96 MiB


def _tile_sizes(rows, l_out, itemsize, block_budget):
    sub = max(8, 32 // itemsize)             # sublane packing: f32 8 / bf16 16 / int8 32
    rows_pad = sub * pl.cdiv(rows, sub)      # rows rounded to sublane multiple
    lane_full = 128 * pl.cdiv(l_out, 128)    # L_out rounded to lane multiple

    # Lane tile: prefer the full 128-rounded L_out (contiguous writebacks, lane
    # grid dim == 1); shrink in 128-lane steps only if a single sublane-group of
    # rows at full width would already blow the per-block budget.
    max_lanes = max(128, ((block_budget // (sub * itemsize)) // 128) * 128)
    tl = min(lane_full, max_lanes)

    # Row tile: largest sublane multiple keeping one block under the budget,
    # capped at 1024 rows and at the padded row count.
    max_rows = max(sub, ((block_budget // (tl * itemsize)) // sub) * sub)
    tr = min(rows_pad, 1024, max_rows)

    # Keep >= 2 row-blocks when possible so the leading "parallel" grid axis can
    # be sharded across v7x's two TensorCores (per-step overhead ~0.35 us).
    if rows_pad > sub and pl.cdiv(rows_pad, tr) < 2:
        tr = sub * pl.cdiv(pl.cdiv(rows_pad, sub), 2)
    return tr, tl


# Inputs no bigger than this take the single-DMA fast path (latency-bound regime).
_FASTPATH_MAX_BYTES = 2 * 1024 * 1024


def chomp1d(x: jnp.ndarray, chomp_size: int, *, use_fast_path=None) -> jnp.ndarray:
    """Removes the last `chomp_size` elements along the last axis of (B, C, L)."""
    # NOTE: PyTorch's x[..., :-0] returns an empty tensor; we reject 0 up front
    # instead of emitting an empty-output kernel.
    assert chomp_size > 0, "chomp_size must be positive (matches x[..., :-s] semantics)"
    B, C, L = x.shape
    L_out = L - chomp_size
    assert L_out > 0, "chomp_size must be smaller than L"

    rows = B * C
    x2 = x.reshape(rows, L)                      # lane-dense 2D view: L on lanes
    itemsize = jnp.dtype(x.dtype).itemsize
    out_shape = jax.ShapeDtypeStruct((rows, L_out), x.dtype)

    fast = use_fast_path
    if fast is None:
        fast = rows * L * itemsize <= _FASTPATH_MAX_BYTES

    # ---- Fast path: one strided HBM->HBM DMA of x2[:, :L_out] (no VMEM bounce).
    if fast:
        try:
            out2 = pl.pallas_call(
                lambda x_ref, o_ref, sem: _dma_chomp_kernel(L_out, x_ref, o_ref, sem),
                out_shape=out_shape,
                in_specs=[pl.BlockSpec(memory_space=pl.ANY)],
                out_specs=pl.BlockSpec(memory_space=pl.ANY),
                scratch_shapes=[pltpu.SemaphoreType.DMA(())],
            )(x2)
            return out2.reshape(B, C, L_out)
        except Exception:
            pass  # fall back to the generic grid-blocked streaming copy below

    # ---- Main path: grid-blocked, double-buffered streaming copy.
    vmem_limit = _vmem_limit_bytes()
    # 2x double-buffered (in + out) blocks = 4 blocks; keep headroom -> budget/6.
    block_budget = min(vmem_limit // 6, 8 * 1024 * 1024)
    TR, TL = _tile_sizes(rows, L_out, itemsize, block_budget)
    grid = (pl.cdiv(rows, TR), pl.cdiv(L_out, TL))

    out2 = pl.pallas_call(
        _copy_kernel,
        out_shape=out_shape,
        grid_spec=pltpu.PrefetchScalarGridSpec(
            num_scalar_prefetch=0,
            grid=grid,
            in_specs=[pl.BlockSpec((TR, TL), lambda i, j: (i, j))],
            out_specs=pl.BlockSpec((TR, TL), lambda i, j: (i, j)),
        ),
        compiler_params=pltpu.CompilerParams(
            dimension_semantics=("parallel", "parallel"),
            vmem_limit_bytes=vmem_limit,
        ),
        cost_estimate=pl.CostEstimate(
            flops=0,
            transcendentals=0,
            bytes_accessed=2 * rows * L_out * itemsize,  # mem-bound copy hint
        ),
    )(x2)
    return out2.reshape(B, C, L_out)


if __name__ == "__main__":
    key = jax.random.PRNGKey(0)
    B, C, L = 2, 4, 16
    chomp_size = 3

    x = jax.random.normal(key, (B, C, L), dtype=jnp.float32)
    y_ref = x[:, :, :-chomp_size]  # plain JAX slice, same semantics as Chomp1d

    # Exercise both code paths: small tensors auto-route to the single-DMA fast
    # path; force the grid-blocked streaming copy as well.
    y_fast = jax.block_until_ready(chomp1d(x, chomp_size))
    y_pipe = jax.block_until_ready(chomp1d(x, chomp_size, use_fast_path=False))

    assert y_fast.shape == (B, C, L - chomp_size), f"bad shape {y_fast.shape}"
    assert jnp.array_equal(y_fast, y_ref), "fast path mismatch vs reference slice"
    assert jnp.array_equal(y_pipe, y_ref), "pipelined path mismatch vs reference slice"

    print("KERNEL_OK")
</pallas_src>

<mosaic_0001>
module attributes {stable_mosaic.version = 11 : i64} {
  func.func @_lambda_(%arg0: memref<8x16xf32, #tpu.memory_space<any>>, %arg1: memref<8x13xf32, #tpu.memory_space<any>>, %arg2: memref<!tpu.dma_semaphore, #tpu.memory_space<semaphore_mem>>) attributes {dimension_semantics = [], scalar_prefetch = 0 : i64, scratch_operands = 1 : i64, tpu.core_type = #tpu.core_type<tc>} {
    %c0_i32 = arith.constant 0 : i32
    %c0_i32_0 = arith.constant 0 : i32
    %0 = tpu.memref_slice %arg0[%c0_i32, %c0_i32_0] : memref<8x16xf32, #tpu.memory_space<any>> -> memref<8x13xf32, #tpu.memory_space<any>>
    tpu.enqueue_dma source(%0 : memref<8x13xf32, #tpu.memory_space<any>>) target(%arg1 : memref<8x13xf32, #tpu.memory_space<any>>) target_semaphore(%arg2 : memref<!tpu.dma_semaphore, #tpu.memory_space<semaphore_mem>>)
    %c0_i32_1 = arith.constant 0 : i32
    %c0_i32_2 = arith.constant 0 : i32
    %1 = tpu.memref_slice %arg0[%c0_i32_1, %c0_i32_2] : memref<8x16xf32, #tpu.memory_space<any>> -> memref<8x13xf32, #tpu.memory_space<any>>
    tpu.wait_dma2 semaphore(%arg2 : memref<!tpu.dma_semaphore, #tpu.memory_space<semaphore_mem>>) src(%1 : memref<8x13xf32, #tpu.memory_space<any>>) dst(%arg1 : memref<8x13xf32, #tpu.memory_space<any>>)
    return
  }
}

module attributes {stable_mosaic.version = 11 : i64} {
  func.func @_copy_kernel(%arg0: i32, %arg1: i32, %arg2: memref<8x128xf32, #tpu.memory_space<vmem>>, %arg3: memref<8x128xf32, #tpu.memory_space<vmem>>) attributes {dimension_semantics = [#tpu.dimension_semantics<parallel>, #tpu.dimension_semantics<parallel>], iteration_bounds = array<i64: 1, 1>, scalar_prefetch = 0 : i64, scratch_operands = 0 : i64, tpu.core_type = #tpu.core_type<tc>, window_params = [{transform_indices = @transform_0, window_bounds = array<i64: 8, 128>}, {transform_indices = @transform_1, window_bounds = array<i64: 8, 128>}]} {
    %c0 = arith.constant 0 : index
    %c0_0 = arith.constant 0 : index
    %0 = vector.load %arg2[%c0, %c0_0] : memref<8x128xf32, #tpu.memory_space<vmem>>, vector<8x128xf32>
    %c0_1 = arith.constant 0 : index
    %c0_2 = arith.constant 0 : index
    %1 = vector.load %arg3[%c0_1, %c0_2] : memref<8x128xf32, #tpu.memory_space<vmem>>, vector<8x128xf32>
    tpu.vector_store %arg3[%c0_1, %c0_2], %0 {strides = array<i32>} : memref<8x128xf32, #tpu.memory_space<vmem>>, vector<8x128xf32>,
    return
  }
  func.func @transform_0(%arg0: i32, %arg1: i32) -> (i32, i32) {
    %c0_i32 = arith.constant 0 : i32
    return %arg0, %arg1 : i32, i32
  }
  func.func @transform_1(%arg0: i32, %arg1: i32) -> (i32, i32) {
    %c0_i32 = arith.constant 0 : i32
    return %arg0, %arg1 : i32, i32
  }
}

</mosaic_0001>

<llo_original>
// kernel: tpu_custom_call.1
$region0: #{tpu_custom_call.1}
  #allocation0 [shape = 'u32[]', space=smem, size = 0x4, offset = 0x4, fixed_abs, tag = 'smem constant byte address 0x4 - core index']
  #allocation1 [shape = 'u32[72,128]{1,0:T(1,128)}', space=vmem, size = 0x9000, scoped, tag = 'internal scratch']
  %s0 = inlined_call_operand.hbm [shape: f32[8,16], index: 0, kind: input, shape index: {}]
  %s1 = inlined_call_operand.hbm [shape: f32[8,13], index: 1, kind: output, shape index: {}]
  %s2 = sld [smem:[#allocation0]]
  $region18: #{tpu_custom_call.1} parent=0
    _
  %s4 = ssub.s32 1, %s2
  %s5 = scalar_select 0, %s4, %s2
  $region1: #{tpu_custom_call.1} parent=0
    #allocation2 [shape = 'u8[4096]{0}', space=vmem, size = 0x1000, scoped, tag = 'input window, operand 0, single buffered']
    #allocation3 [shape = 's32[1]{0}', space=sflag, size = 0x4, scoped, tag = 'scoped memory for tpu_custom_call.1']
    #allocation4 [shape = 's32[1]{0}', space=sflag, size = 0x4, scoped, tag = 'scoped memory for tpu_custom_call.1']
    #allocation5 [shape = 'u8[4096]{0}', space=vmem, size = 0x1000, scoped, tag = 'output window, operand 0, single buffered']
    %6 = vsyncpa [#allocation3], 0
    %7 = vsyncpa [#allocation4], 0
    // Predicated region
    $region2: #{tpu_custom_call.1} parent=1 // pred_check
      _
    $region3: #{tpu_custom_call.1} parent=1 // pred_check_branch
      %9 = sbr.rel (0) target = $region5
    $region4: #{tpu_custom_call.1} parent=1 // pred_region
      %11 = vsyncadd [#allocation3], 0
      %s13 = sshll.u32 %s0, 4
      %s14 = int_to_ptr.hbm [resolvable:$true] %s13
      %s15 = sshll.u32 [#allocation2], 4
      %s16 = int_to_ptr.vmem [resolvable:$true] %s15
      %18 = dma.hbm_to_vmem [thread:$0]  %s14, 128, %s16, [#allocation3]
    $region5: #{tpu_custom_call.1} parent=1 // pred_fallthru
      _
    // Predicated region
    $region6: #{tpu_custom_call.1} parent=1 // pred_check
      _
    $region7: #{tpu_custom_call.1} parent=1 // pred_check_branch
      %20 = sbr.rel (0) target = $region9
    $region8: #{tpu_custom_call.1} parent=1 // pred_region
      %22 = dma.done [#allocation3], 128
    $region9: #{tpu_custom_call.1} parent=1 // pred_fallthru
      _
    %v23 = vld [vmem:[#allocation2] sm:$0xff]
    %24 = vst [vmem:[#allocation5] sm:$0xff] %v23
    // Predicated region
    $region10: #{tpu_custom_call.1} parent=1 // pred_check
      _
    $region11: #{tpu_custom_call.1} parent=1 // pred_check_branch
      %26 = sbr.rel (0) target = $region13
    $region12: #{tpu_custom_call.1} parent=1 // pred_region
      %28 = vsyncadd [#allocation4], 0
      %s30 = sshll.u32 [#allocation5], 4
      %s31 = int_to_ptr.vmem [resolvable:$true] %s30
      %s32 = sshll.u32 %s1, 4
      %s33 = int_to_ptr.hbm [resolvable:$true] %s32
      %35 = dma.vmem_to_hbm [thread:$0]  %s31, 128, %s33, [#allocation4]
    $region13: #{tpu_custom_call.1} parent=1 // pred_fallthru
      _
    // Predicated region
    $region14: #{tpu_custom_call.1} parent=1 // pred_check
      _
    $region15: #{tpu_custom_call.1} parent=1 // pred_check_branch
      %37 = sbr.rel (0) target = $region17
    $region16: #{tpu_custom_call.1} parent=1 // pred_region
      %39 = dma.done [#allocation4], 128
    $region17: #{tpu_custom_call.1} parent=1 // pred_fallthru
      _
    %40 = vsyncpa [#allocation3], 1
    %41 = vsyncpa [#allocation4], 1

</llo_original>
